<compile_context>
chip_gen: v6e
topology: v6e:2x2x1
jax: 0.10.0
libtpu: 0.0.40
codegen_flags: <defaults>
</compile_context>

<pallas_src>
import functools

import jax
import jax.numpy as jnp
from jax.experimental import pallas as pl
from jax.experimental.pallas import tpu as pltpu


def _linear_kernel(x_ref, w_ref, b_ref, o_ref):
    # x_ref: (TB, H), w_ref: (H, Op), b_ref: (1, Op), o_ref: (TB, Op)
    acc = jnp.dot(x_ref[...], w_ref[...], preferred_element_type=jnp.float32)
    o_ref[...] = (acc + b_ref[...]).astype(o_ref.dtype)


def _round_up(n, m):
    return ((n + m - 1) // m) * m


def _pick_batch_tile(batch, hid, out_pad, itemsize, tile_budget_bytes):
    """Largest batch tile (multiple of 8) whose double-buffered x/out tiles
    plus the resident weight/bias fit in `tile_budget_bytes` of VMEM."""
    per_row = 2 * (hid + out_pad) * itemsize          # x tile + out tile, 2-deep
    resident = (hid * out_pad + out_pad) * 4          # W (itemsize<=4) + f32 bias
    avail = max(tile_budget_bytes - resident, 8 * per_row)
    tb = min(avail // per_row, 2048)                  # cap: per-step overhead amortized
    tb = max(8, (tb // 8) * 8)
    return min(tb, _round_up(batch, 8))               # never bigger than the (padded) batch


def logreg_forward(x, w_t, b, *,
                   tile_budget_bytes=32 * 1024 * 1024,
                   vmem_limit_bytes=48 * 1024 * 1024):
    """y = x @ w_t + b   (== PyTorch nn.Linear(hid_dim, out_dim))

    x:   (B, H)        activations
    w_t: (H, O)        weight already stored transposed (do w.T once at init)
    b:   (O,)          bias
    """
    B, H = x.shape
    H2, O = w_t.shape
    assert H == H2 and b.shape == (O,)
    itemsize = jnp.dtype(x.dtype).itemsize

    # --- lane-dense output: pad out_dim up to a multiple of 128 -------------
    O_pad = _round_up(max(O, 128), 128)
    if O_pad != O:
        w_t = jnp.pad(w_t, ((0, 0), (0, O_pad - O)))
        b = jnp.pad(b, (0, O_pad - O))
    b2 = b.reshape(1, O_pad).astype(jnp.float32)      # bias add stays in f32

    # --- tile the batch axis, pad B to a whole number of tiles --------------
    TB = _pick_batch_tile(B, H, O_pad, itemsize, tile_budget_bytes)
    B_pad = _round_up(B, TB)
    if B_pad != B:
        x = jnp.pad(x, ((0, B_pad - B), (0, 0)))
    grid = (B_pad // TB,)

    flops = 2 * B_pad * H * O_pad
    bytes_accessed = (B_pad * H + H * O_pad) * itemsize + O_pad * 4 + B_pad * O_pad * itemsize

    y_pad = pl.pallas_call(
        _linear_kernel,
        out_shape=jax.ShapeDtypeStruct((B_pad, O_pad), x.dtype),
        grid_spec=pltpu.PrefetchScalarGridSpec(
            num_scalar_prefetch=0,
            grid=grid,
            in_specs=[
                pl.BlockSpec((TB, H), lambda i: (i, 0)),       # streamed
                pl.BlockSpec((H, O_pad), lambda i: (0, 0)),    # resident weight
                pl.BlockSpec((1, O_pad), lambda i: (0, 0)),    # resident bias
            ],
            out_specs=pl.BlockSpec((TB, O_pad), lambda i: (i, 0)),
        ),
        compiler_params=pltpu.CompilerParams(
            dimension_semantics=("parallel",),                 # megacore / v7x 2-TC
            vmem_limit_bytes=vmem_limit_bytes,                 # safe on v7x's 64 MiB
        ),
        cost_estimate=pl.CostEstimate(
            flops=flops, transcendentals=0, bytes_accessed=bytes_accessed),
    )(x, w_t, b2)

    # strip batch / lane padding
    return y_pad[:B, :O]


if __name__ == "__main__":
    # Small, module-consistent shapes: batch=8, hid_dim=32, out_dim=16.
    batch, hid_dim, out_dim = 8, 32, 16

    key = jax.random.PRNGKey(0)
    kx, kw, kb = jax.random.split(key, 3)

    # nn.Linear-style uniform(-1/sqrt(H), 1/sqrt(H)) init.
    bound = 1.0 / (hid_dim ** 0.5)
    w = jax.random.uniform(kw, (out_dim, hid_dim), jnp.float32, -bound, bound)  # PyTorch layout
    b = jax.random.uniform(kb, (out_dim,), jnp.float32, -bound, bound)
    x = jax.random.normal(kx, (batch, hid_dim), jnp.float32)

    # Transpose ONCE (persistent (H, O) layout), not per forward call.
    w_t = jnp.asarray(w.T)

    fwd = jax.jit(functools.partial(logreg_forward))

    y = jax.block_until_ready(fwd(x, w_t, b))
    y_ref = x @ w.T + b
    assert y.shape == (batch, out_dim)
    assert jnp.allclose(y, y_ref, atol=1e-5, rtol=1e-5)

    # Second check: non-multiple-of-8 batch exercises the tiling/padding path.
    x2 = jax.random.normal(jax.random.PRNGKey(1), (300, hid_dim), jnp.float32)
    y2 = jax.block_until_ready(fwd(x2, w_t, b))
    y2_ref = x2 @ w.T + b
    assert y2.shape == (300, out_dim)
    assert jnp.allclose(y2, y2_ref, atol=1e-5, rtol=1e-5)

    print("KERNEL_OK")
</pallas_src>

<mosaic_0001>
module attributes {stable_mosaic.version = 11 : i64} {
  func.func @_linear_kernel(%arg0: i32, %arg1: memref<8x32xf32, #tpu.memory_space<vmem>>, %arg2: memref<32x128xf32, #tpu.memory_space<vmem>>, %arg3: memref<1x128xf32, #tpu.memory_space<vmem>>, %arg4: memref<8x128xf32, #tpu.memory_space<vmem>>) attributes {dimension_semantics = [#tpu.dimension_semantics<parallel>], iteration_bounds = array<i64: 1>, scalar_prefetch = 0 : i64, scratch_operands = 0 : i64, tpu.core_type = #tpu.core_type<tc>, window_params = [{transform_indices = @transform_0, window_bounds = array<i64: 8, 32>}, {pipeline_mode = #tpu.pipeline_mode<synchronous>, transform_indices = @transform_1, window_bounds = array<i64: 32, 128>}, {pipeline_mode = #tpu.pipeline_mode<synchronous>, transform_indices = @transform_2, window_bounds = array<i64: 1, 128>}, {transform_indices = @transform_3, window_bounds = array<i64: 8, 128>}]} {
    %c0 = arith.constant 0 : index
    %c0_0 = arith.constant 0 : index
    %0 = vector.load %arg1[%c0, %c0_0] : memref<8x32xf32, #tpu.memory_space<vmem>>, vector<8x32xf32>
    %c0_1 = arith.constant 0 : index
    %c0_2 = arith.constant 0 : index
    %1 = vector.load %arg2[%c0_1, %c0_2] : memref<32x128xf32, #tpu.memory_space<vmem>>, vector<32x128xf32>
    %cst = arith.constant dense<0.000000e+00> : vector<8x128xf32>
    %2 = tpu.matmul %0, %1, %cst {dimension_numbers = #tpu.dot_dimension_numbers<[1], [0], [0], [1], [0, 0, 1, 1], [], []>} : vector<8x32xf32>, vector<32x128xf32>, vector<8x128xf32> -> vector<8x128xf32>
    %c0_3 = arith.constant 0 : index
    %c0_4 = arith.constant 0 : index
    %3 = vector.load %arg3[%c0_3, %c0_4] : memref<1x128xf32, #tpu.memory_space<vmem>>, vector<1x128xf32>
    %4 = vector.broadcast %3 : vector<1x128xf32> to vector<8x128xf32>
    %5 = arith.addf %2, %4 : vector<8x128xf32>
    %c0_5 = arith.constant 0 : index
    %c0_6 = arith.constant 0 : index
    %6 = vector.load %arg4[%c0_5, %c0_6] : memref<8x128xf32, #tpu.memory_space<vmem>>, vector<8x128xf32>
    tpu.vector_store %arg4[%c0_5, %c0_6], %5 {strides = array<i32>} : memref<8x128xf32, #tpu.memory_space<vmem>>, vector<8x128xf32>,
    return
  }
  func.func @transform_0(%arg0: i32) -> (i32, i32) {
    %c0_i32 = arith.constant 0 : i32
    %c0_i32_0 = arith.constant 0 : i32
    return %arg0, %c0_i32 : i32, i32
  }
  func.func @transform_1(%arg0: i32) -> (i32, i32) {
    %c0_i32 = arith.constant 0 : i32
    %c0_i32_0 = arith.constant 0 : i32
    %c0_i32_1 = arith.constant 0 : i32
    return %c0_i32, %c0_i32_0 : i32, i32
  }
  func.func @transform_2(%arg0: i32) -> (i32, i32) {
    %c0_i32 = arith.constant 0 : i32
    %c0_i32_0 = arith.constant 0 : i32
    %c0_i32_1 = arith.constant 0 : i32
    return %c0_i32, %c0_i32_0 : i32, i32
  }
  func.func @transform_3(%arg0: i32) -> (i32, i32) {
    %c0_i32 = arith.constant 0 : i32
    %c0_i32_0 = arith.constant 0 : i32
    return %arg0, %c0_i32 : i32, i32
  }
}

</mosaic_0001>

<llo_original>
// kernel: logreg_forward.1
$region0: #{logreg_forward.1}
  #allocation0 [shape = 'u32[]', space=smem, size = 0x4, offset = 0x4, fixed_abs, tag = 'smem constant byte address 0x4 - core index']
  #allocation1 [shape = 'u32[144,128]{1,0:T(1,128)}', space=vmem, size = 0x12000, scoped, tag = 'internal scratch']
  %s0 = inlined_call_operand.vmem [shape: f32[8,32], index: 0, kind: input, shape index: {}]
  %s1 = inlined_call_operand.vmem [shape: f32[32,128], index: 1, kind: input, shape index: {}]
  %s2 = inlined_call_operand.vmem [shape: f32[1,128], index: 2, kind: input, shape index: {}]
  %s3 = inlined_call_operand.hbm [shape: f32[8,128], index: 3, kind: output, shape index: {}]
  %s4 = sld [smem:[#allocation0]]
  $region22: #{logreg_forward.1} parent=0
    _
  %s6 = ssub.s32 1, %s4
  %s7 = scalar_select 0, %s6, %s4
  $region1: #{logreg_forward.1} parent=0
    #allocation2 [shape = 'u8[4096]{0}', space=vmem, size = 0x1000, scoped, tag = 'output window, operand 0, single buffered']
    #allocation3 [shape = 's32[1]{0}', space=sflag, size = 0x4, scoped, tag = 'scoped memory for logreg_forward.1']
    %8 = vsyncpa [#allocation3], 0
    // Predicated region
    $region2: #{logreg_forward.1} parent=1 // pred_check
      _
    $region3: #{logreg_forward.1} parent=1 // pred_check_branch
      %10 = sbr.rel (0) target = $region5
    $region4: #{logreg_forward.1} parent=1 // pred_region
      _
    $region5: #{logreg_forward.1} parent=1 // pred_fallthru
      _
    // Predicated region
    $region6: #{logreg_forward.1} parent=1 // pred_check
      _
    $region7: #{logreg_forward.1} parent=1 // pred_check_branch
      %12 = sbr.rel (0) target = $region9
    $region8: #{logreg_forward.1} parent=1 // pred_region
      _
    $region9: #{logreg_forward.1} parent=1 // pred_fallthru
      _
    // Predicated region
    $region10: #{logreg_forward.1} parent=1 // pred_check
      _
    $region11: #{logreg_forward.1} parent=1 // pred_check_branch
      %14 = sbr.rel (0) target = $region13
    $region12: #{logreg_forward.1} parent=1 // pred_region
      _
    $region13: #{logreg_forward.1} parent=1 // pred_fallthru
      _
    %v15 = vld [vmem:[%s0] sm:$0xff]
    %v16 = vld [vmem:[%s1] sm:$0xff]
    %v17 = vld [vmem:[%s1 + $0x8] sm:$0xff]
    %v18 = vld [vmem:[%s1 + $0x10] sm:$0xff]
    %v19 = vld [vmem:[%s1 + $0x18] sm:$0xff]
    %v20 = vld [vmem:[%s2] sm:$0x1]
    %v22 = vlaneseq
    %v23 = vshrl.u32 %v22, 7
    %v24 = vsub.s32 0, %v23
    %v25 = vrot.slane %v20, %v24
    %vm27 = vcmask 261120
    %v29 = vsel %vm27, %v15, 0
    %31 = vmatprep.subr.mxu0 0.0
    %32 = vmatpush1.msra.mxu0 0.0
    %33 = vmatprep.subr.mxu0 0.0
    %34 = vmatpush1.msra.mxu0 0.0
    %35 = vmatprep.subr.mxu0 0.0
    %36 = vmatpush1.msra.mxu0 0.0
    %37 = vmatprep.subr.mxu0 0.0
    %38 = vmatpush1.msra.mxu0 0.0
    %39 = vmatprep.subr.mxu0 0.0
    %40 = vmatpush1.msra.mxu0 0.0
    %41 = vmatprep.subr.mxu0 0.0
    %42 = vmatpush1.msra.mxu0 0.0
    %43 = vmatprep.subr.mxu0 0.0
    %44 = vmatpush1.msra.mxu0 0.0
    %45 = vmatprep.subr.mxu0 0.0
    %46 = vmatpush1.msra.mxu0 0.0
    %47 = vmatprep.subr.mxu0 0.0
    %48 = vmatpush1.msra.mxu0 0.0
    %49 = vmatprep.subr.mxu0 0.0
    %50 = vmatpush1.msra.mxu0 0.0
    %51 = vmatprep.subr.mxu0 0.0
    %52 = vmatpush1.msra.mxu0 0.0
    %53 = vmatprep.subr.mxu0 0.0
    %54 = vmatpush1.msra.mxu0 0.0
    %55 = vmatprep.subr.mxu0 0.0
    %56 = vmatpush1.msra.mxu0 %v19
    %57 = vmatprep.subr.mxu0 0.0
    %58 = vmatpush1.msra.mxu0 %v18
    %59 = vmatprep.subr.mxu0 0.0
    %60 = vmatpush1.msra.mxu0 %v17
    %61 = vmatprep.subr.mxu0 0.0
    %62 = vmatpush1.msra.mxu0 %v16
    %63 = vmatprep.subr.mxu0 0.0
    %64 = vmatpush2.msra.mxu0 0.0
    %65 = vmatprep.subr.mxu0 0.0
    %66 = vmatpush2.msra.mxu0 0.0
    %67 = vmatprep.subr.mxu0 0.0
    %68 = vmatpush2.msra.mxu0 0.0
    %69 = vmatprep.subr.mxu0 0.0
    %70 = vmatpush2.msra.mxu0 0.0
    %71 = vmatprep.subr.mxu0 0.0
    %72 = vmatpush2.msra.mxu0 0.0
    %73 = vmatprep.subr.mxu0 0.0
    %74 = vmatpush2.msra.mxu0 0.0
    %75 = vmatprep.subr.mxu0 0.0
    %76 = vmatpush2.msra.mxu0 0.0
    %77 = vmatprep.subr.mxu0 0.0
    %78 = vmatpush2.msra.mxu0 0.0
    %79 = vmatprep.subr.mxu0 0.0
    %80 = vmatpush2.msra.mxu0 0.0
    %81 = vmatprep.subr.mxu0 0.0
    %82 = vmatpush2.msra.mxu0 0.0
    %83 = vmatprep.subr.mxu0 0.0
    %84 = vmatpush2.msra.mxu0 0.0
    %85 = vmatprep.subr.mxu0 0.0
    %86 = vmatpush2.msra.mxu0 0.0
    %87 = vmatprep.subr.mxu0 0.0
    %88 = vmatpush2.msra.mxu0 0.0
    %89 = vmatprep.subr.mxu0 0.0
    %90 = vmatpush2.msra.mxu0 0.0
    %91 = vmatprep.subr.mxu0 0.0
    %92 = vmatpush2.msra.mxu0 0.0
    %93 = vmatprep.subr.mxu0 0.0
    %94 = vmatpush2.msra.mxu0 0.0
    %95 = vmatprep.mubr.f32.mxu0 0.0
    %96 = vmatmul.mubr.f32.gmra.mxu0 %v29
    %v97 = vpop.f32.mrf.mxu0
    %v98 = vadd.f32 %v25, %v97
    %v99 = vpop.f32.mrf.mxu0
    %100 = vdwg.mxu0
    %101 = vst [vmem:[#allocation2] sm:$0xff] %v98
    // Predicated region
    $region14: #{logreg_forward.1} parent=1 // pred_check
      _
    $region15: #{logreg_forward.1} parent=1 // pred_check_branch
      %103 = sbr.rel (0) target = $region17
    $region16: #{logreg_forward.1} parent=1 // pred_region
      %s105 = ssub.s32 128, 128
      %106 = vsyncadd [#allocation3], %s105
      %s108 = sshll.u32 [#allocation2], 4
      %s109 = int_to_ptr.vmem [resolvable:$true] %s108
      %111 = dma.vmem_to_hbm [thread:$0]  %s109, 128, %s3, [#allocation3]
    $region17: #{logreg_forward.1} parent=1 // pred_fallthru
      _
    // Predicated region
    $region18: #{logreg_forward.1} parent=1 // pred_check
      _
    $region19: #{logreg_forward.1} parent=1 // pred_check_branch
      %113 = sbr.rel (0) target = $region21
    $region20: #{logreg_forward.1} parent=1 // pred_region
      %114 = dma.done [#allocation3], 128
    $region21: #{logreg_forward.1} parent=1 // pred_fallthru
      _
    %115 = vsyncpa [#allocation3], 1

</llo_original>
